<compile_context>
chip_gen: v7x
topology: tpu7x:2x2x1
jax: 0.10.0
libtpu: 0.0.40
codegen_flags: <defaults>
</compile_context>

<pallas_src>
import functools

import jax
import jax.numpy as jnp
from jax.experimental import pallas as pl
from jax.experimental.pallas import tpu as pltpu

NUM_ANCHORS = 2
NUM_CLASSES = 20
LAMBDA_COORD = 5.0
LAMBDA_NOOBJ = 0.5

LANES = 128
# Packed row layout (built in the wrapper).  bbox/obj lanes = (b, a, h, w)
# flattened; class lanes = (b, h, w) flattened.
ROW_PXY = 0      # rows 0-1 : pred x, y logits (need sigmoid)
ROW_PWH = 2      # rows 2-3 : pred w, h logits (need exp)
ROW_TXY = 4      # rows 4-5 : target x, y
ROW_TWH = 6      # rows 6-7 : target w, h
ROW_TCONF = 8    # row 8    : target confidence
ROW_POBJ = 9     # row 9    : pred objectness
ROW_TOBJ = 10    # row 10   : target objectness
ROW_OFF = 11     # row 11   : precomputed w*stride offset (added to x AND y)
ROW_CLSP = 16    # rows 16-35: class logits   (starts on a multiple of 8)
ROW_CLST = 40    # rows 40-59: class targets  (starts on a multiple of 8)
NUM_ROWS = 64


def _yolo_loss_kernel(x_ref, out_ref, *, batch, anchors, grid, num_classes):
    G = grid
    gg = G * G
    ba = batch * anchors
    stride = 1.0 / G

    off = x_ref[ROW_OFF:ROW_OFF + 1, :]                       # (1, 128)

    # ---- bounding-box IoU (transcendentals only on the rows that need them) -
    p_xy = jax.nn.sigmoid(x_ref[ROW_PXY:ROW_PXY + 2, :]) * stride + off   # (2,128)
    p_wh = jnp.exp(x_ref[ROW_PWH:ROW_PWH + 2, :]) * stride                # (2,128)
    t_xy = x_ref[ROW_TXY:ROW_TXY + 2, :] * stride + off
    t_wh = x_ref[ROW_TWH:ROW_TWH + 2, :] * stride

    p_min = p_xy - 0.5 * p_wh
    p_max = p_xy + 0.5 * p_wh
    t_min = t_xy - 0.5 * t_wh
    t_max = t_xy + 0.5 * t_wh
    inter = jnp.maximum(jnp.minimum(p_max, t_max) - jnp.maximum(p_min, t_min), 0.0)
    inter_area = inter[0:1, :] * inter[1:2, :]                 # (1, 128)
    p_area = p_wh[0:1, :] * p_wh[1:2, :]
    t_area = t_wh[0:1, :] * t_wh[1:2, :]
    union = p_area + t_area - inter_area
    # No epsilon: faithful to the reference module.  On zero-padded lanes
    # union == stride^2 > 0 and inter_area == 0, so iou == 0 there.
    iou = inter_area * pl.reciprocal(union, approx=True)       # (1, 128)
    tc = x_ref[ROW_TCONF:ROW_TCONF + 1, :]                     # (1, 128)

    # ---- objectness ----------------------------------------------------------
    d_obj = x_ref[ROW_POBJ:ROW_POBJ + 1, :] - x_ref[ROW_TOBJ:ROW_TOBJ + 1, :]

    # ---- per-lane weighted quadratic contributions (one lane reduce) ---------
    # bbox broadcast sum expands to:
    #   (B*A)*sum(iou^2) + (G*G)*sum(conf^2) - 2*cross
    lam_c = LAMBDA_COORD / batch
    lam_n = LAMBDA_NOOBJ / batch
    quad = (lam_c * (float(ba) * iou * iou + float(gg) * tc * tc)
            + lam_n * (d_obj * d_obj))                          # (1, 128)

    # ---- bbox broadcast cross term -------------------------------------------
    # cross = sum_j [sum_{h,w} iou(group j)] * [sum_{b,a} conf(spatial j)]
    # where group j = (b, a) flat index and spatial j = (h, w) flat index.
    # The diagonal pairing is valid because batch == anchors == grid (asserted).
    rows_i = jax.lax.broadcasted_iota(jnp.int32, (ba, LANES), 0)
    lanes_i = jax.lax.broadcasted_iota(jnp.int32, (ba, LANES), 1)
    m_grp = (lanes_i >= rows_i * gg) & (lanes_i < rows_i * gg + gg)
    m_spat = jnp.bitwise_and(lanes_i, gg - 1) == rows_i        # pad lanes: tc == 0
    s_iou = jnp.sum(jnp.where(m_grp, iou, 0.0), axis=1, keepdims=True)    # (ba, 1)
    s_conf = jnp.sum(jnp.where(m_spat, tc, 0.0), axis=1, keepdims=True)   # (ba, 1)
    cross = jnp.sum(s_iou * s_conf)

    # ---- class loss: single log-sum-exp pass over all (b, h, w) positions ----
    logits = x_ref[ROW_CLSP:ROW_CLSP + num_classes, :]         # (20, 128)
    tcls = x_ref[ROW_CLST:ROW_CLST + num_classes, :]
    m = jnp.max(logits, axis=0, keepdims=True)                 # (1, 128)
    lse = m + jnp.log(jnp.sum(jnp.exp(logits - m), axis=0, keepdims=True))
    ce = tcls * (lse - logits)                                 # pad lanes: tcls == 0

    cls_scale = 1.0 / float(batch * gg) / float(batch)
    total = jnp.sum(quad) - 2.0 * lam_c * cross + cls_scale * jnp.sum(ce)
    out_ref[0, 0] = total


@jax.jit
def yolo_loss_pallas(inputs, targets):
    A, NC = NUM_ANCHORS, NUM_CLASSES
    B, C, H, W = inputs.shape
    assert C == 5 * A + A + NC, "channel count must be 32"
    assert H == W, "grid must be square"
    G = H
    # The reference PyTorch broadcast (iou[B,A,G,G] vs conf[B,A,G,G,1,1]) and
    # the in-kernel algebraic expansion require these sizes.
    assert B == A and G == A, "original module requires batch == grid == num_anchors == 2"
    gg = G * G
    assert (gg & (gg - 1)) == 0
    stride = 1.0 / G

    p = inputs.astype(jnp.float32)
    t = targets.astype(jnp.float32)

    # bbox: rows = coordinate (x,y,w,h,conf), lanes = (b, a, h, w)
    bp = p[:, :5 * A].reshape(B, A, 5, gg).transpose(2, 0, 1, 3).reshape(5, B * A * gg)
    bt = t[:, :5 * A].reshape(B, A, 5, gg).transpose(2, 0, 1, 3).reshape(5, B * A * gg)
    # objectness: lanes = (b, a, h, w)
    op = p[:, 5 * A:6 * A].reshape(1, B * A * gg)
    ot = t[:, 5 * A:6 * A].reshape(1, B * A * gg)
    # per-lane offset: varies along w and is added to BOTH x and y (faithful to
    # the original module's arange(G).view(1,1,-1,1) broadcast -- do not "fix").
    off = ((jnp.arange(B * A * gg) % G).astype(jnp.float32) * stride).reshape(1, -1)
    # classes: rows = class, lanes = (b, h, w)
    cp = p[:, 6 * A:].transpose(1, 0, 2, 3).reshape(NC, B * gg)
    ct = t[:, 6 * A:].transpose(1, 0, 2, 3).reshape(NC, B * gg)

    # One fused, lane-dense, sublane-aligned slab (rows 12-15, 36-39, 60-63 pad).
    # Pred confidence (bp[4]) is dropped: the module never uses it in the loss.
    top = jnp.concatenate([bp[0:4], bt[0:4], bt[4:5], op, ot, off], axis=0)  # (12,16)
    top = jnp.pad(top, ((0, ROW_CLSP - top.shape[0]), (0, LANES - top.shape[1])))
    cls_p = jnp.pad(cp, ((0, ROW_CLST - ROW_CLSP - NC), (0, LANES - cp.shape[1])))
    cls_t = jnp.pad(ct, ((0, NUM_ROWS - ROW_CLST - NC), (0, LANES - ct.shape[1])))
    packed = jnp.concatenate([top, cls_p, cls_t], axis=0)      # (64, 128)

    kernel = functools.partial(_yolo_loss_kernel, batch=B, anchors=A, grid=G,
                               num_classes=NC)
    out = pl.pallas_call(
        kernel,
        out_shape=jax.ShapeDtypeStruct((1, 1), jnp.float32),
        in_specs=[pl.BlockSpec(memory_space=pltpu.MemorySpace.VMEM)],
        out_specs=pl.BlockSpec(memory_space=pltpu.MemorySpace.SMEM),
        cost_estimate=pl.CostEstimate(flops=4096, transcendentals=256,
                                      bytes_accessed=NUM_ROWS * LANES * 4 + 4),
    )(packed)
    return out[0, 0]


def yolo_loss_ref(inputs, targets):
    """Pure-JAX op-by-op translation of the PyTorch forward (for validation)."""
    A, NC = NUM_ANCHORS, NUM_CLASSES
    B = inputs.shape[0]
    G = inputs.shape[2]
    stride = 1.0 / G
    bp = inputs[:, :A * 5].reshape(B, A, 5, G, G).transpose(0, 1, 3, 4, 2)
    bt = targets[:, :A * 5].reshape(B, A, 5, G, G).transpose(0, 1, 3, 4, 2)
    op = inputs[:, A * 5:A * 5 + A]
    ot = targets[:, A * 5:A * 5 + A]
    cp = inputs[:, A * 5 + A:]
    ct = targets[:, A * 5 + A:]
    offs = jnp.arange(G, dtype=jnp.float32).reshape(1, 1, G, 1) * stride
    p_xy = jax.nn.sigmoid(bp[..., :2]) * stride + offs
    p_wh = jnp.exp(bp[..., 2:4]) * stride
    t_xy = bt[..., :2] * stride + offs
    t_wh = bt[..., 2:4] * stride
    t_conf = bt[..., 4:5][..., None]                       # (B,A,H,W,1,1)
    p_min, p_max = p_xy - p_wh / 2, p_xy + p_wh / 2
    t_min, t_max = t_xy - t_wh / 2, t_xy + t_wh / 2
    p_area = jnp.prod(p_wh, axis=-1)
    t_area = jnp.prod(t_wh, axis=-1)
    i_wh = jnp.clip(jnp.minimum(p_max, t_max) - jnp.maximum(p_min, t_min), 0.0, None)
    i_area = jnp.prod(i_wh, axis=-1)
    iou = i_area / (p_area + t_area - i_area)
    bbox_loss = jnp.sum((iou - t_conf) ** 2) / B
    obj_loss = jnp.sum((op[..., None] - ot[..., None]) ** 2) / B
    logp = jax.nn.log_softmax(cp, axis=1)
    class_loss = jnp.mean(-jnp.sum(ct * logp, axis=1)) / B
    return LAMBDA_COORD * bbox_loss + LAMBDA_NOOBJ * obj_loss + class_loss


if __name__ == "__main__":
    key = jax.random.PRNGKey(0)
    k1, k2 = jax.random.split(key)
    # B=2, C=32 (= 2*5 + 2 + 20), G=2 — the only grid size the original
    # module's broadcasting accepts with 2 anchors.
    inputs = jax.random.normal(k1, (2, 32, 2, 2), dtype=jnp.float32)
    targets = jax.random.normal(k2, (2, 32, 2, 2), dtype=jnp.float32)

    out = yolo_loss_pallas(inputs, targets)
    out = jax.block_until_ready(out)

    ref = yolo_loss_ref(inputs, targets)
    assert jnp.isfinite(out), out
    assert jnp.allclose(out, ref, rtol=1e-3, atol=1e-3), (out, ref)
    print("KERNEL_OK")
</pallas_src>

<mosaic_0001>
module attributes {stable_mosaic.version = 11 : i64} {
  func.func @_yolo_loss_kernel(%arg0: memref<64x128xf32, #tpu.memory_space<vmem>>, %arg1: memref<1x1xf32, #tpu.memory_space<smem>>) attributes {dimension_semantics = [], scalar_prefetch = 0 : i64, scratch_operands = 0 : i64, tpu.core_type = #tpu.core_type<tc>} {
    %c11 = arith.constant 11 : index
    %c0 = arith.constant 0 : index
    %0 = vector.load %arg0[%c11, %c0] : memref<64x128xf32, #tpu.memory_space<vmem>>, vector<1x128xf32>
    %c0_0 = arith.constant 0 : index
    %c0_1 = arith.constant 0 : index
    %1 = vector.load %arg0[%c0_0, %c0_1] : memref<64x128xf32, #tpu.memory_space<vmem>>, vector<2x128xf32>
    %2 = arith.negf %1 : vector<2x128xf32>
    %3 = math.exp %2 : vector<2x128xf32>
    %cst = arith.constant 1.000000e+00 : f32
    %4 = vector.broadcast %cst : f32 to vector<2x128xf32>
    %5 = arith.addf %4, %3 : vector<2x128xf32>
    %6 = arith.divf %4, %5 : vector<2x128xf32>
    %cst_2 = arith.constant 5.000000e-01 : f32
    %7 = vector.broadcast %cst_2 : f32 to vector<2x128xf32>
    %8 = arith.mulf %6, %7 : vector<2x128xf32>
    %9 = vector.broadcast %0 : vector<1x128xf32> to vector<2x128xf32>
    %10 = arith.addf %8, %9 : vector<2x128xf32>
    %c2 = arith.constant 2 : index
    %c0_3 = arith.constant 0 : index
    %11 = vector.load %arg0[%c2, %c0_3] : memref<64x128xf32, #tpu.memory_space<vmem>>, vector<2x128xf32>
    %12 = math.exp %11 : vector<2x128xf32>
    %cst_4 = arith.constant 5.000000e-01 : f32
    %13 = vector.broadcast %cst_4 : f32 to vector<2x128xf32>
    %14 = arith.mulf %12, %13 : vector<2x128xf32>
    %c4 = arith.constant 4 : index
    %c0_5 = arith.constant 0 : index
    %15 = vector.load %arg0[%c4, %c0_5] : memref<64x128xf32, #tpu.memory_space<vmem>>, vector<2x128xf32>
    %cst_6 = arith.constant 5.000000e-01 : f32
    %16 = vector.broadcast %cst_6 : f32 to vector<2x128xf32>
    %17 = arith.mulf %15, %16 : vector<2x128xf32>
    %18 = vector.broadcast %0 : vector<1x128xf32> to vector<2x128xf32>
    %19 = arith.addf %17, %18 : vector<2x128xf32>
    %c6 = arith.constant 6 : index
    %c0_7 = arith.constant 0 : index
    %20 = vector.load %arg0[%c6, %c0_7] : memref<64x128xf32, #tpu.memory_space<vmem>>, vector<2x128xf32>
    %cst_8 = arith.constant 5.000000e-01 : f32
    %21 = vector.broadcast %cst_8 : f32 to vector<2x128xf32>
    %22 = arith.mulf %20, %21 : vector<2x128xf32>
    %cst_9 = arith.constant 5.000000e-01 : f32
    %23 = vector.broadcast %cst_9 : f32 to vector<2x128xf32>
    %24 = arith.mulf %23, %14 : vector<2x128xf32>
    %25 = arith.subf %10, %24 : vector<2x128xf32>
    %cst_10 = arith.constant 5.000000e-01 : f32
    %26 = vector.broadcast %cst_10 : f32 to vector<2x128xf32>
    %27 = arith.mulf %26, %14 : vector<2x128xf32>
    %28 = arith.addf %10, %27 : vector<2x128xf32>
    %cst_11 = arith.constant 5.000000e-01 : f32
    %29 = vector.broadcast %cst_11 : f32 to vector<2x128xf32>
    %30 = arith.mulf %29, %22 : vector<2x128xf32>
    %31 = arith.subf %19, %30 : vector<2x128xf32>
    %cst_12 = arith.constant 5.000000e-01 : f32
    %32 = vector.broadcast %cst_12 : f32 to vector<2x128xf32>
    %33 = arith.mulf %32, %22 : vector<2x128xf32>
    %34 = arith.addf %19, %33 : vector<2x128xf32>
    %35 = arith.minimumf %28, %34 : vector<2x128xf32>
    %36 = arith.maximumf %25, %31 : vector<2x128xf32>
    %37 = arith.subf %35, %36 : vector<2x128xf32>
    %cst_13 = arith.constant 0.000000e+00 : f32
    %38 = vector.broadcast %cst_13 : f32 to vector<2x128xf32>
    %39 = arith.maximumf %37, %38 : vector<2x128xf32>
    %40 = vector.extract_strided_slice %39 {offsets = [0, 0], sizes = [1, 128], strides = [1, 1]} : vector<2x128xf32> to vector<1x128xf32>
    %41 = vector.extract_strided_slice %39 {offsets = [1, 0], sizes = [1, 128], strides = [1, 1]} : vector<2x128xf32> to vector<1x128xf32>
    %42 = arith.mulf %40, %41 : vector<1x128xf32>
    %43 = vector.extract_strided_slice %14 {offsets = [0, 0], sizes = [1, 128], strides = [1, 1]} : vector<2x128xf32> to vector<1x128xf32>
    %44 = vector.extract_strided_slice %14 {offsets = [1, 0], sizes = [1, 128], strides = [1, 1]} : vector<2x128xf32> to vector<1x128xf32>
    %45 = arith.mulf %43, %44 : vector<1x128xf32>
    %46 = vector.extract_strided_slice %22 {offsets = [0, 0], sizes = [1, 128], strides = [1, 1]} : vector<2x128xf32> to vector<1x128xf32>
    %47 = vector.extract_strided_slice %22 {offsets = [1, 0], sizes = [1, 128], strides = [1, 1]} : vector<2x128xf32> to vector<1x128xf32>
    %48 = arith.mulf %46, %47 : vector<1x128xf32>
    %49 = arith.addf %45, %48 : vector<1x128xf32>
    %50 = arith.subf %49, %42 : vector<1x128xf32>
    %51 = tpu.reciprocal %50 {approx = true} : vector<1x128xf32> -> vector<1x128xf32>
    %52 = arith.mulf %42, %51 : vector<1x128xf32>
    %c8 = arith.constant 8 : index
    %c0_14 = arith.constant 0 : index
    %53 = vector.load %arg0[%c8, %c0_14] : memref<64x128xf32, #tpu.memory_space<vmem>>, vector<1x128xf32>
    %c9 = arith.constant 9 : index
    %c0_15 = arith.constant 0 : index
    %54 = vector.load %arg0[%c9, %c0_15] : memref<64x128xf32, #tpu.memory_space<vmem>>, vector<1x128xf32>
    %c10 = arith.constant 10 : index
    %c0_16 = arith.constant 0 : index
    %55 = vector.load %arg0[%c10, %c0_16] : memref<64x128xf32, #tpu.memory_space<vmem>>, vector<1x128xf32>
    %56 = arith.subf %54, %55 : vector<1x128xf32>
    %cst_17 = arith.constant 4.000000e+00 : f32
    %57 = vector.broadcast %cst_17 : f32 to vector<1x128xf32>
    %58 = arith.mulf %57, %52 : vector<1x128xf32>
    %59 = arith.mulf %58, %52 : vector<1x128xf32>
    %cst_18 = arith.constant 4.000000e+00 : f32
    %60 = vector.broadcast %cst_18 : f32 to vector<1x128xf32>
    %61 = arith.mulf %60, %53 : vector<1x128xf32>
    %62 = arith.mulf %61, %53 : vector<1x128xf32>
    %63 = arith.addf %59, %62 : vector<1x128xf32>
    %cst_19 = arith.constant 2.500000e+00 : f32
    %64 = vector.broadcast %cst_19 : f32 to vector<1x128xf32>
    %65 = arith.mulf %64, %63 : vector<1x128xf32>
    %66 = arith.mulf %56, %56 : vector<1x128xf32>
    %cst_20 = arith.constant 2.500000e-01 : f32
    %67 = vector.broadcast %cst_20 : f32 to vector<1x128xf32>
    %68 = arith.mulf %67, %66 : vector<1x128xf32>
    %69 = arith.addf %65, %68 : vector<1x128xf32>
    %70 = tpu.iota {dimensions = array<i32: 0>} : vector<4x128xi32>
    %71 = tpu.iota {dimensions = array<i32: 1>} : vector<4x128xi32>
    %c4_i32 = arith.constant 4 : i32
    %72 = vector.broadcast %c4_i32 : i32 to vector<4x128xi32>
    %73 = arith.muli %70, %72 : vector<4x128xi32>
    %74 = arith.cmpi sge, %71, %73 : vector<4x128xi32>
    %c4_i32_21 = arith.constant 4 : i32
    %75 = vector.broadcast %c4_i32_21 : i32 to vector<4x128xi32>
    %76 = arith.muli %70, %75 : vector<4x128xi32>
    %c4_i32_22 = arith.constant 4 : i32
    %77 = vector.broadcast %c4_i32_22 : i32 to vector<4x128xi32>
    %78 = arith.addi %76, %77 : vector<4x128xi32>
    %79 = arith.cmpi slt, %71, %78 : vector<4x128xi32>
    %80 = arith.andi %74, %79 : vector<4x128xi1>
    %c3_i32 = arith.constant 3 : i32
    %81 = vector.broadcast %c3_i32 : i32 to vector<4x128xi32>
    %82 = arith.andi %71, %81 : vector<4x128xi32>
    %83 = arith.cmpi eq, %82, %70 : vector<4x128xi32>
    %cst_23 = arith.constant 0.000000e+00 : f32
    %84 = vector.shape_cast %52 : vector<1x128xf32> to vector<1x128xf32>
    %85 = vector.broadcast %84 : vector<1x128xf32> to vector<4x128xf32>
    %86 = vector.broadcast %cst_23 : f32 to vector<4x128xf32>
    %87 = arith.select %80, %85, %86 : vector<4x128xi1>, vector<4x128xf32>
    %cst_24 = arith.constant dense<0.000000e+00> : vector<4xf32>
    %88 = vector.multi_reduction <add>, %87, %cst_24 [1] : vector<4x128xf32> to vector<4xf32>
    %89 = vector.shape_cast %88 : vector<4xf32> to vector<4x1xf32>
    %cst_25 = arith.constant 0.000000e+00 : f32
    %90 = vector.shape_cast %53 : vector<1x128xf32> to vector<1x128xf32>
    %91 = vector.broadcast %90 : vector<1x128xf32> to vector<4x128xf32>
    %92 = vector.broadcast %cst_25 : f32 to vector<4x128xf32>
    %93 = arith.select %83, %91, %92 : vector<4x128xi1>, vector<4x128xf32>
    %cst_26 = arith.constant dense<0.000000e+00> : vector<4xf32>
    %94 = vector.multi_reduction <add>, %93, %cst_26 [1] : vector<4x128xf32> to vector<4xf32>
    %95 = vector.shape_cast %94 : vector<4xf32> to vector<4x1xf32>
    %96 = arith.mulf %89, %95 : vector<4x1xf32>
    %97 = vector.shape_cast %96 : vector<4x1xf32> to vector<1x4x1xf32>
    %cst_27 = arith.constant dense<0.000000e+00> : vector<1xf32>
    %98 = vector.multi_reduction <add>, %97, %cst_27 [1, 2] : vector<1x4x1xf32> to vector<1xf32>
    %99 = vector.shape_cast %98 : vector<1xf32> to vector<1x1x1xf32>
    %100 = vector.extract %99[0, 0, 0] : f32 from vector<1x1x1xf32>
    %c16 = arith.constant 16 : index
    %c0_28 = arith.constant 0 : index
    %101 = vector.load %arg0[%c16, %c0_28] : memref<64x128xf32, #tpu.memory_space<vmem>>, vector<20x128xf32>
    %c40 = arith.constant 40 : index
    %c0_29 = arith.constant 0 : index
    %102 = vector.load %arg0[%c40, %c0_29] : memref<64x128xf32, #tpu.memory_space<vmem>>, vector<20x128xf32>
    %cst_30 = arith.constant dense<0xFF800000> : vector<128xf32>
    %103 = vector.multi_reduction <maximumf>, %101, %cst_30 [0] : vector<20x128xf32> to vector<128xf32>
    %104 = vector.shape_cast %103 : vector<128xf32> to vector<1x128xf32>
    %105 = vector.broadcast %104 : vector<1x128xf32> to vector<20x128xf32>
    %106 = arith.subf %101, %105 : vector<20x128xf32>
    %107 = math.exp %106 : vector<20x128xf32>
    %cst_31 = arith.constant dense<0.000000e+00> : vector<128xf32>
    %108 = vector.multi_reduction <add>, %107, %cst_31 [0] : vector<20x128xf32> to vector<128xf32>
    %109 = vector.shape_cast %108 : vector<128xf32> to vector<1x128xf32>
    %110 = math.log %109 : vector<1x128xf32>
    %111 = arith.addf %104, %110 : vector<1x128xf32>
    %112 = vector.broadcast %111 : vector<1x128xf32> to vector<20x128xf32>
    %113 = arith.subf %112, %101 : vector<20x128xf32>
    %114 = arith.mulf %102, %113 : vector<20x128xf32>
    %115 = vector.shape_cast %69 : vector<1x128xf32> to vector<1x1x128xf32>
    %cst_32 = arith.constant dense<0.000000e+00> : vector<1xf32>
    %116 = vector.multi_reduction <add>, %115, %cst_32 [1, 2] : vector<1x1x128xf32> to vector<1xf32>
    %117 = vector.shape_cast %116 : vector<1xf32> to vector<1x1x1xf32>
    %118 = vector.extract %117[0, 0, 0] : f32 from vector<1x1x1xf32>
    %cst_33 = arith.constant 5.000000e+00 : f32
    %119 = arith.mulf %cst_33, %100 : f32
    %120 = arith.subf %118, %119 : f32
    %121 = vector.shape_cast %114 : vector<20x128xf32> to vector<1x20x128xf32>
    %cst_34 = arith.constant dense<0.000000e+00> : vector<1xf32>
    %122 = vector.multi_reduction <add>, %121, %cst_34 [1, 2] : vector<1x20x128xf32> to vector<1xf32>
    %123 = vector.shape_cast %122 : vector<1xf32> to vector<1x1x1xf32>
    %124 = vector.extract %123[0, 0, 0] : f32 from vector<1x1x1xf32>
    %cst_35 = arith.constant 6.250000e-02 : f32
    %125 = arith.mulf %cst_35, %124 : f32
    %126 = arith.addf %120, %125 : f32
    %c0_36 = arith.constant 0 : index
    %c0_37 = arith.constant 0 : index
    %127 = memref.load %arg1[%c0_36, %c0_37] : memref<1x1xf32, #tpu.memory_space<smem>>
    memref.store %126, %arg1[%c0_36, %c0_37] : memref<1x1xf32, #tpu.memory_space<smem>>
    return
  }
}

</mosaic_0001>

<llo_original>
// kernel: yolo_loss_pallas.1
$region0: #{yolo_loss_pallas.1}
  #allocation0 [shape = 'u32[]', space=smem, size = 0x4, offset = 0x4, fixed_abs, tag = 'smem constant byte address 0x4 - core index']
  #allocation1 [shape = 'u32[144,128]{1,0:T(1,128)}', space=vmem, size = 0x12000, scoped, tag = 'internal scratch']
  %s0 = inlined_call_operand.vmem [shape: f32[64,128], index: 0, kind: input, shape index: {}]
  %s1 = inlined_call_operand.hbm [shape: f32[1,1], index: 1, kind: output, shape index: {}]
  %s2 = sld [smem:[#allocation0]]
  $region14: #{yolo_loss_pallas.1} parent=0
    _
  %s4 = ssub.s32 1, %s2
  %s5 = scalar_select 0, %s4, %s2
  $region1: #{yolo_loss_pallas.1} parent=0
    #allocation2 [shape = 'u8[512]{0}', space=smem, size = 0x200, scoped, tag = 'output window, operand 0, single buffered']
    #allocation3 [shape = 's32[1]{0}', space=sflag, size = 0x4, scoped, tag = 'scoped memory for yolo_loss_pallas.1']
    %6 = vsyncpa [#allocation3], 0
    // Predicated region
    $region2: #{yolo_loss_pallas.1} parent=1 // pred_check
      _
    $region3: #{yolo_loss_pallas.1} parent=1 // pred_check_branch
      %8 = sbr.rel (0) target = $region5
    $region4: #{yolo_loss_pallas.1} parent=1 // pred_region
      _
    $region5: #{yolo_loss_pallas.1} parent=1 // pred_fallthru
      _
    %v9 = vld [vmem:[%s0 + $0xb] sm:$0x1]
    %v10 = vld [vmem:[%s0] sm:$0x3]
    %v11 = vxor.u32 %v10, 2147483648
    %v12 = vmul.f32 %v11, 1.442695
    %v13 = vpow.pop %v12
    %v14 = vadd.f32 %v13, 1.0
    %v15 = vrcp.pop %v14
    %v16 = vmul.f32 1.0, %v15
    %v17 = vmul.f32 %v16, 0.5
    %v18 = vlaneseq
    %v19 = vshrl.u32 %v18, 7
    %v20 = vsub.s32 0, %v19
    %v21 = vrot.slane %v9, %v20
    %v22 = vadd.f32 %v17, %v21
    %v23 = vld [vmem:[%s0 + $0x2] sm:$0x3]
    %v24 = vmul.f32 %v23, 1.442695
    %v25 = vpow.pop %v24
    %v26 = vmul.f32 %v25, 0.5
    %v27 = vld [vmem:[%s0 + $0x4] sm:$0x3]
    %v28 = vmul.f32 %v27, 0.5
    %v29 = vadd.f32 %v28, %v21
    %v30 = vld [vmem:[%s0 + $0x6] sm:$0x3]
    %v31 = vmul.f32 %v30, 0.5
    %v32 = vmul.f32 %v26, 0.5
    %v33 = vsub.f32 %v22, %v32
    %v34 = vadd.f32 %v22, %v32
    %v35 = vmul.f32 %v31, 0.5
    %v36 = vsub.f32 %v29, %v35
    %v37 = vadd.f32 %v29, %v35
    %v38 = vmin.f32 %v34, %v37
    %v39 = vmax.f32 %v33, %v36
    %v40 = vsub.f32 %v38, %v39
    %v41 = vmax.f32 %v40, 0.0
    %v43 = vrot.slane %v41, 1
    %v45 = vmul.f32 %v41, %v43
    %v47 = vrot.slane %v26, 1
    %v49 = vmul.f32 %v26, %v47
    %v51 = vrot.slane %v31, 1
    %v53 = vmul.f32 %v31, %v51
    %v54 = vadd.f32 %v49, %v53
    %v55 = vsub.f32 %v54, %v45
    %v56 = vrcp.pop %v55
    %v57 = vmul.f32 %v45, %v56
    %v58 = vld [vmem:[%s0 + $0x8] sm:$0x1]
    %v59 = vld [vmem:[%s0 + $0x9] sm:$0x1]
    %v60 = vld [vmem:[%s0 + $0xa] sm:$0x1]
    %v61 = vsub.f32 %v59, %v60
    %v62 = vmul.f32 %v57, 4.0
    %v63 = vmul.f32 %v62, %v57
    %v64 = vmul.f32 %v58, 4.0
    %v65 = vmul.f32 %v64, %v58
    %v66 = vadd.f32 %v63, %v65
    %v67 = vmul.f32 %v66, 2.5
    %v68 = vmul.f32 %v61, %v61
    %v69 = vmul.f32 %v68, 0.25
    %v70 = vadd.f32 %v67, %v69
    %v71 = vlaneseq
    %v72 = vshrl.u32 %v71, 7
    %v73 = vlaneseq
    %v74 = vand.u32 %v73, 127
    %v75 = vmul.u32 %v72, 4
    %vm76 = vcmp.ge.s32.totalorder %v74, %v75
    %v77 = vadd.s32 %v75, 4
    %vm78 = vcmp.lt.s32.totalorder %v74, %v77
    %vm79 = vmand %vm76, %vm78
    %v80 = vand.u32 %v74, 3
    %vm81 = vcmp.eq.s32.totalorder %v80, %v72
    %v82 = vlaneseq
    %v83 = vshrl.u32 %v82, 7
    %v84 = vsub.s32 0, %v83
    %v85 = vrot.slane %v57, %v84
    %v86 = vsel %vm79, %v85, 0.0
    %vm87 = vcmask 1043456
    %v88 = vsel %vm87, %v86, 0.0
    %89 = vadd.xlane.f32.xlu0 %v88
    %v90 = vpop.xlane.xlu0 %89
    %v91 = vlaneseq
    %v92 = vshrl.u32 %v91, 7
    %v93 = vsub.s32 0, %v92
    %v94 = vrot.slane %v58, %v93
    %v95 = vsel %vm81, %v94, 0.0
    %v96 = vsel %vm87, %v95, 0.0
    %97 = vadd.xlane.f32.xlu0 %v96
    %v98 = vpop.xlane.xlu0 %97
    %v99 = vmul.f32 %v90, %v98
    %vm100 = vcmask 3072
    %v101 = vsel %vm100, %v99, 0.0
    %102 = vadd.xlane.f32.xlu0 %v101
    %v103 = vpop.xlane.xlu0 %102
    %v104 = vrot.slane %v103, 4
    %v105 = vadd.f32 %v103, %v104
    %v106 = vrot.slane %v105, 2
    %v107 = vadd.f32 %v105, %v106
    %v108 = vrot.slane %v107, 1
    %v109 = vadd.f32 %v107, %v108
    %s110 = vtos %v109
    %v111 = vld [vmem:[%s0 + $0x10] sm:$0xff]
    %v112 = vld [vmem:[%s0 + $0x18] sm:$0xff]
    %v113 = vld [vmem:[%s0 + $0x20] sm:$0xf]
    %v114 = vld [vmem:[%s0 + $0x28] sm:$0xff]
    %v115 = vld [vmem:[%s0 + $0x30] sm:$0xff]
    %v116 = vld [vmem:[%s0 + $0x38] sm:$0xf]
    %v117 = vsel %vm87, %v113, -inf
    %v118 = vmax.f32 %v111, %v112
    %v119 = vmax.f32 %v118, %v117
    %v120 = vrot.slane %v119, 4
    %v121 = vmax.f32 %v119, %v120
    %v122 = vrot.slane %v121, 2
    %v123 = vmax.f32 %v121, %v122
    %v124 = vrot.slane %v123, 1
    %v125 = vmax.f32 %v123, %v124
    %v126 = vsub.f32 %v111, %v125
    %v127 = vsub.f32 %v112, %v125
    %v128 = vsub.f32 %v113, %v125
    %v129 = vmul.f32 %v126, 1.442695
    %v130 = vpow.pop %v129
    %v131 = vmul.f32 %v127, 1.442695
    %v132 = vpow.pop %v131
    %v133 = vmul.f32 %v128, 1.442695
    %v134 = vpow.pop %v133
    %v135 = vadd.f32 %v130, %v132
    %v136 = vsel %vm87, %v134, 0.0
    %v137 = vadd.f32 %v135, %v136
    %v138 = vrot.slane %v137, 4
    %v139 = vadd.f32 %v137, %v138
    %v140 = vrot.slane %v139, 2
    %v141 = vadd.f32 %v139, %v140
    %v142 = vrot.slane %v141, 1
    %v143 = vadd.f32 %v141, %v142
    %v144 = vlog2.pop %v143
    %v145 = vmul.f32 %v144, 0.6931472
    %v146 = vadd.f32 %v125, %v145
    %v147 = vsub.f32 %v146, %v111
    %v148 = vsub.f32 %v146, %v112
    %v149 = vsub.f32 %v146, %v113
    %v150 = vmul.f32 %v114, %v147
    %v151 = vmul.f32 %v115, %v148
    %v152 = vmul.f32 %v116, %v149
    %vm153 = vcmask 1040384
    %v154 = vsel %vm153, %v70, 0.0
    %155 = vadd.xlane.f32.xlu0 %v154
    %v156 = vpop.xlane.xlu0 %155
    %v157 = vrot.slane %v156, 4
    %v158 = vadd.f32 %v156, %v157
    %v159 = vrot.slane %v158, 2
    %v160 = vadd.f32 %v158, %v159
    %v161 = vrot.slane %v160, 1
    %v162 = vadd.f32 %v160, %v161
    %s163 = vtos %v162
    %s164 = smul.f32 %s110, 5.0
    %s165 = ssub.f32 %s163, %s164
    %v166 = vadd.f32 %v150, %v151
    %v167 = vsel %vm87, %v152, 0.0
    %v168 = vadd.f32 %v166, %v167
    %169 = vadd.xlane.f32.xlu0 %v168
    %v170 = vpop.xlane.xlu0 %169
    %v171 = vrot.slane %v170, 4
    %v172 = vadd.f32 %v170, %v171
    %v173 = vrot.slane %v172, 2
    %v174 = vadd.f32 %v172, %v173
    %v175 = vrot.slane %v174, 1
    %v176 = vadd.f32 %v174, %v175
    %s177 = vtos %v176
    %s178 = smul.f32 %s177, 0.0625
    %s179 = sadd.f32 %s165, %s178
    %s180 = scalar_lea.smem [#allocation2], 0
    %181 = sst [smem:[%s180]] %s179
    // Predicated region
    $region6: #{yolo_loss_pallas.1} parent=1 // pred_check
      _
    $region7: #{yolo_loss_pallas.1} parent=1 // pred_check_branch
      %183 = sbr.rel (0) target = $region9
    $region8: #{yolo_loss_pallas.1} parent=1 // pred_region
      %s185 = ssub.s32 16, 16
      %186 = vsyncadd [#allocation3], %s185
      %189 = dma.smem_to_hbm [#allocation2], 16, %s1, [#allocation3]
    $region9: #{yolo_loss_pallas.1} parent=1 // pred_fallthru
      _
    // Predicated region
    $region10: #{yolo_loss_pallas.1} parent=1 // pred_check
      _
    $region11: #{yolo_loss_pallas.1} parent=1 // pred_check_branch
      %191 = sbr.rel (0) target = $region13
    $region12: #{yolo_loss_pallas.1} parent=1 // pred_region
      %192 = dma.done [#allocation3], 16
    $region13: #{yolo_loss_pallas.1} parent=1 // pred_fallthru
      _
    %193 = sfence
    %194 = vsyncpa [#allocation3], 1

</llo_original>
